<compile_context>
chip_gen: v5e
topology: v5e:2x2
jax: 0.10.0
libtpu: 0.0.40
codegen_flags: <defaults>
</compile_context>

<pallas_src>
import math

import jax
import jax.numpy as jnp
from jax import lax
from jax.experimental import pallas as pl
from jax.experimental.pallas import tpu as pltpu


def _copy_block_kernel(strip_ref, out_ref):
    # All gather logic lives in the BlockSpec index_maps; the body is one
    # lane-dense block copy so the store path (the real bottleneck) is dense.
    out_ref[...] = strip_ref[...]


def _round_up(x, m):
    return ((x + m - 1) // m) * m


def _tile_unit(d_model):
    """Smallest T with T % 8 == 0 and (T * d_model) % 128 == 0, i.e. the
    granularity at which (T, T*d_model) blocks are (8,128)-tiling legal and
    lane-dense (no masked vst partial stores)."""
    lane = 128 // math.gcd(d_model, 128)
    return math.lcm(8, lane)


def _pick_tile(length, d_model, itemsize, block_budget_bytes, cap=256):
    """Largest legal square tile T (multiple of the tile unit) such that one
    (T, T*d_model) block fits the per-block byte budget and T does not exceed
    one padded copy of the sequence."""
    unit = _tile_unit(d_model)
    limit = min(max(cap, unit), _round_up(length, unit))
    t = unit
    while (t + unit) <= limit and (t + unit) ** 2 * d_model * itemsize <= block_budget_bytes:
        t += unit
    return t


def relative_positional_encoding(table, length, *, max_rel, tile=None,
                                 block_budget_bytes=4 * 1024 * 1024):
    """table: (2*max_rel + 1, d_model) embedding parameter.
    Returns (length, length, d_model), identical to the PyTorch forward."""
    vocab, d_model = table.shape
    assert vocab == 2 * max_rel + 1
    itemsize = jnp.dtype(table.dtype).itemsize

    if tile is None:
        tile = _pick_tile(length, d_model, itemsize, block_budget_bytes)
    T = int(tile)
    if not (T % 8 == 0 and (T * d_model) % 128 == 0):
        raise ValueError(
            f"tile={T} with d_model={d_model} does not keep the "
            "(T, T*d_model) block (8,128)-legal / lane-dense")

    # Pad the sequence length up to a multiple of the tile; the padded rows /
    # columns are computed (they are valid clamped embeddings anyway) and
    # sliced off at the end.
    Lp = _round_up(length, T)
    n = Lp // T  # blocks per output axis; strip_rows has 2n-1 lane blocks

    # Toeplitz strip: strip[s] = table[clamp(s - (Lp-1), -K, K) + K],
    # s in [0, 2*Lp - 2].
    rel = jnp.clip(jnp.arange(2 * Lp - 1) - (Lp - 1), -max_rel, max_rel) + max_rel
    strip_flat = jnp.take(table, rel, axis=0).reshape(-1)      # ((2Lp-1)*d_model,)

    # T row-shifted, lane-flattened copies so each (T, T*d_model) output block
    # is an *aligned* lane-block of this array:
    #   strip_rows[r, x] = strip_flat[x + (T-1-r)*d_model]
    # Built with static slices + stack (pure copies; no index tensor, no gather).
    W = (2 * Lp - T) * d_model
    rows = [
        lax.slice_in_dim(strip_flat, (T - 1 - r) * d_model,
                         (T - 1 - r) * d_model + W, axis=0)
        for r in range(T)
    ]
    strip_rows = jnp.stack(rows, axis=0)                        # (T, W)

    block_bytes = T * T * d_model * itemsize
    vmem_limit = max(32 * 1024 * 1024, 4 * block_bytes + (1 << 20))

    out2d = pl.pallas_call(
        _copy_block_kernel,
        out_shape=jax.ShapeDtypeStruct((Lp, Lp * d_model), table.dtype),
        grid_spec=pltpu.PrefetchScalarGridSpec(
            num_scalar_prefetch=0,
            grid=(n, n),
            in_specs=[
                # Output block (i, j) == strip_rows lane-block (0, j - i + n - 1).
                pl.BlockSpec((T, T * d_model), lambda i, j: (0, j - i + n - 1)),
            ],
            out_specs=pl.BlockSpec((T, T * d_model), lambda i, j: (i, j)),
        ),
        compiler_params=pltpu.CompilerParams(
            dimension_semantics=("parallel", "parallel"),
            vmem_limit_bytes=vmem_limit,
        ),
    )(strip_rows)

    out = out2d.reshape(Lp, Lp, d_model)
    if Lp != length:
        out = out[:length, :length, :]
    return out


if __name__ == "__main__":
    key = jax.random.PRNGKey(0)

    def reference(table, length, max_rel):
        rv = jnp.arange(length)
        r = jnp.clip(rv[None, :] - rv[:, None], -max_rel, max_rel) + max_rel
        return table[r]

    k1, k2, k3 = jax.random.split(key, 3)

    # Config 1: d_model < 128 (exercises the lane-dense flattened output path),
    # explicit tile -> 4x4 grid.
    d1, K1, L1 = 32, 8, 64
    t1 = jax.random.normal(k1, (2 * K1 + 1, d1), dtype=jnp.float32)
    o1 = jax.block_until_ready(
        relative_positional_encoding(t1, L1, max_rel=K1, tile=16))
    assert o1.shape == (L1, L1, d1)
    assert jnp.allclose(o1, reference(t1, L1, K1), atol=1e-6, rtol=1e-6)

    # Config 2: d_model = 128, spec-default max_relative_position = 32.
    d2, K2, L2 = 128, 32, 32
    t2 = jax.random.normal(k2, (2 * K2 + 1, d2), dtype=jnp.float32)
    o2 = jax.block_until_ready(
        relative_positional_encoding(t2, L2, max_rel=K2, tile=8))
    assert o2.shape == (L2, L2, d2)
    assert jnp.allclose(o2, reference(t2, L2, K2), atol=1e-6, rtol=1e-6)

    # Config 3: length that no tile divides (50) -> padded path + auto tile.
    d3, K3, L3 = 32, 8, 50
    t3 = jax.random.normal(k3, (2 * K3 + 1, d3), dtype=jnp.float32)
    o3 = jax.block_until_ready(
        relative_positional_encoding(t3, L3, max_rel=K3))
    assert o3.shape == (L3, L3, d3)
    assert jnp.allclose(o3, reference(t3, L3, K3), atol=1e-6, rtol=1e-6)

    print("KERNEL_OK")
</pallas_src>

<mosaic_0001>
module attributes {stable_mosaic.version = 11 : i64} {
  func.func @_copy_block_kernel(%arg0: i32, %arg1: i32, %arg2: memref<16x512xf32, #tpu.memory_space<vmem>>, %arg3: memref<16x512xf32, #tpu.memory_space<vmem>>) attributes {dimension_semantics = [#tpu.dimension_semantics<parallel>, #tpu.dimension_semantics<parallel>], iteration_bounds = array<i64: 4, 4>, scalar_prefetch = 0 : i64, scratch_operands = 0 : i64, tpu.core_type = #tpu.core_type<tc>, window_params = [{transform_indices = @transform_0, window_bounds = array<i64: 16, 512>}, {transform_indices = @transform_1, window_bounds = array<i64: 16, 512>}]} {
    %c0 = arith.constant 0 : index
    %c0_0 = arith.constant 0 : index
    %0 = vector.load %arg2[%c0, %c0_0] : memref<16x512xf32, #tpu.memory_space<vmem>>, vector<16x512xf32>
    %c0_1 = arith.constant 0 : index
    %c0_2 = arith.constant 0 : index
    %1 = vector.load %arg3[%c0_1, %c0_2] : memref<16x512xf32, #tpu.memory_space<vmem>>, vector<16x512xf32>
    tpu.vector_store %arg3[%c0_1, %c0_2], %0 {strides = array<i32>} : memref<16x512xf32, #tpu.memory_space<vmem>>, vector<16x512xf32>,
    return
  }
  func.func @transform_0(%arg0: i32, %arg1: i32) -> (i32, i32) {
    %0 = arith.subi %arg1, %arg0 : i32
    %c4_i32 = arith.constant 4 : i32
    %1 = arith.addi %0, %c4_i32 : i32
    %c1_i32 = arith.constant 1 : i32
    %2 = arith.subi %1, %c1_i32 : i32
    %c0_i32 = arith.constant 0 : i32
    %c0_i32_0 = arith.constant 0 : i32
    return %c0_i32, %2 : i32, i32
  }
  func.func @transform_1(%arg0: i32, %arg1: i32) -> (i32, i32) {
    %c0_i32 = arith.constant 0 : i32
    return %arg0, %arg1 : i32, i32
  }
}

</mosaic_0001>

<llo_original>
// kernel: tpu_custom_call.1
$region0: #{tpu_custom_call.1}
  #allocation0 [shape = 'u32[]', space=smem, size = 0x4, offset = 0x4, fixed_abs, tag = 'smem constant byte address 0x4 - core index']
  #allocation1 [shape = 'u32[72,128]{1,0:T(1,128)}', space=vmem, size = 0x9000, scoped, tag = 'internal scratch']
  %s0 = inlined_call_operand.hbm [shape: f32[16,3584], index: 0, kind: input, shape index: {}]
  %s1 = inlined_call_operand.hbm [shape: f32[64,2048], index: 1, kind: output, shape index: {}]
  %s2 = sld [smem:[#allocation0]]
  $region41: #{tpu_custom_call.1} parent=0
    _
  %s4 = ssub.s32 1, %s2
  %s5 = scalar_select 0, %s4, %s2
  $region1: #{tpu_custom_call.1} parent=0
    #allocation2 [shape = 'u8[65536]{0}', space=vmem, size = 0x10000, scoped, tag = 'input window, operand 0']
    #allocation3 [shape = 's32[2]{0}', space=sflag, size = 0x8, scoped, tag = 'scoped memory for tpu_custom_call.1']
    #allocation4 [shape = 's32[2]{0}', space=sflag, size = 0x8, scoped, tag = 'scoped memory for tpu_custom_call.1']
    #allocation5 [shape = 'u8[65536]{0}', space=vmem, size = 0x10000, scoped, tag = 'output window, operand 0']
    %6 = vsyncpa [#allocation3], 0
    %s7 = scalar_lea.sflag [#allocation3], 1
    %8 = vsyncpa %s7, 0
    %9 = vsyncpa [#allocation4], 0
    %s10 = scalar_lea.sflag [#allocation4], 1
    %11 = vsyncpa %s10, 0
    loop: start=0, step=1, limit=18
    $region2: #{tpu_custom_call.1} parent=1 // loop_pre_header
      _
    $region3: #{tpu_custom_call.1} parent=1 // loop_header
      %s13 = sphi 0, %s17
      %p14 = scmp.ge.s32.totalorder %s13, 18
      %s20 = sphi 0, %s32
      %s21 = sphi 0, %s28
      %s22 = sphi 0, %s20
      %s23 = sphi 0, %s21
      %s24 = sphi 0, %s22
      %s25 = sphi 0, %s23
      %s39 = sphi 0, %s41
      %s42 = sphi 0, %s39
      %s43 = sphi 0, %s42
      %s59 = sphi 0, %s43
      %s67 = sphi 0, %s69
      %s70 = sphi 0, %s67
      %s71 = sphi 0, %s70
      %s87 = sphi 0, %s71
    $region4: #{tpu_custom_call.1} parent=1 // loop_header_branch
      %16 = sbr.rel (%p14) target = $region8
    $region5: #{tpu_custom_call.1} parent=1 // loop_body
      %s18 = ssub.s32 %s13, 1
      %s19 = ssub.s32 %s13, 2
      %s26 = sadd.s32 1, %s21
      %p27 = scmp.ge.s32.totalorder %s26, 4
      %s28 = scalar_select %p27, 0, %s26
      %s29 = sadd.s32 1, %s20
      %s30 = scalar_select %p27, %s29, %s20
      %p31 = scmp.ge.s32.totalorder %s30, 4
      %s32 = scalar_select %p31, 0, %s30
      %s33 = ssub.s32 %s21, %s20
      %s34 = sadd.s32 %s33, 3
      %s35 = ssub.s32 %s28, %s32
      %s36 = sadd.s32 %s35, 3
      %s37 = ssub.s32 %s34, %s36
      %p38 = scmp.eq.s32.totalorder %s37, 0
      %s40 = sadd.s32 %s39, 1
      %s41 = scalar_select %p38, %s39, %s40
      %p44 = pneg %p38
      %p45 = scmp.eq.s32.totalorder %s13, 15
      %p46 = por %p44, %p45
      %p47 = scmp.ne.s32.totalorder %s39, %s42
      %p48 = scmp.eq.s32.totalorder %s13, 0
      %p49 = por %p47, %p48
      %p50 = scmp.ne.s32.totalorder %s39, %s42
      %p51 = scmp.eq.s32.totalorder %s18, 15
      %p52 = por %p50, %p51
      %p53 = scmp.ne.s32.totalorder %s42, %s43
      %p54 = scmp.eq.s32.totalorder %s18, 0
      %p55 = por %p53, %p54
      %p56 = scmp.ne.s32.totalorder %s42, %s43
      %p57 = scmp.eq.s32.totalorder %s19, 15
      %p58 = por %p56, %p57
      %p60 = scmp.ne.s32.totalorder %s43, %s59
      %p61 = scmp.eq.s32.totalorder %s19, 0
      %p62 = por %p60, %p61
      %s63 = ssub.s32 %s20, %s32
      %s64 = ssub.s32 %s21, %s28
      %s65 = sor.u32 %s63, %s64
      %p66 = scmp.eq.s32.totalorder %s65, 0
      %s68 = sadd.s32 %s67, 1
      %s69 = scalar_select %p66, %s67, %s68
      %p72 = pneg %p66
      %p73 = scmp.eq.s32.totalorder %s13, 15
      %p74 = por %p72, %p73
      %p75 = scmp.ne.s32.totalorder %s67, %s70
      %p76 = scmp.eq.s32.totalorder %s13, 0
      %p77 = por %p75, %p76
      %p78 = scmp.ne.s32.totalorder %s67, %s70
      %p79 = scmp.eq.s32.totalorder %s18, 15
      %p80 = por %p78, %p79
      %p81 = scmp.ne.s32.totalorder %s70, %s71
      %p82 = scmp.eq.s32.totalorder %s18, 0
      %p83 = por %p81, %p82
      %p84 = scmp.ne.s32.totalorder %s70, %s71
      %p85 = scmp.eq.s32.totalorder %s19, 15
      %p86 = por %p84, %p85
      %p88 = scmp.ne.s32.totalorder %s71, %s87
      %p89 = scmp.eq.s32.totalorder %s19, 0
      %p90 = por %p88, %p89
      %p91 = scmp.le.s32.totalorder 1, %s13
      %p92 = scmp.lt.s32.totalorder %s13, 17
      %p93 = pnand %p91, %p92
      %p94 = pneg %p93
      // Predicated region
      $region9: #{tpu_custom_call.1} parent=5 // pred_check
        _
      $region10: #{tpu_custom_call.1} parent=5 // pred_check_branch
        %96 = sbr.rel (%p93) target = $region12
      $region11: #{tpu_custom_call.1} parent=5 // pred_region
        %s97 = ssub.s32 %s13, 1
      $region12: #{tpu_custom_call.1} parent=5 // pred_fallthru
        _
      %p98 = scmp.lt.s32.totalorder %s13, 16
      // Predicated region
      $region13: #{tpu_custom_call.1} parent=5 // pred_check
        %p99 = pneg %p98
      $region14: #{tpu_custom_call.1} parent=5 // pred_check_branch
        %101 = sbr.rel (%p99) target = $region16
      $region15: #{tpu_custom_call.1} parent=5 // pred_region
        // Predicated region
        $region17: #{tpu_custom_call.1} parent=15 // pred_check
          %p102 = pneg %p49
        $region18: #{tpu_custom_call.1} parent=15 // pred_check_branch
          %104 = sbr.rel (%p102) target = $region20
        $region19: #{tpu_custom_call.1} parent=15 // pred_region
          %s105 = sand.u32 %s39, 1
          %s106 = scalar_lea.sflag [#allocation3], %s105
          %s107 = sand.u32 %s39, 1
          %s108 = smul.addr %s107, 64
          %s109 = scalar_lea.vmem [#allocation2], %s108
          %s110 = ssub.s32 %s21, %s20
          %s111 = sadd.s32 %s110, 3
          %s112 = smul.u32 4, %s111
          %114 = vsyncadd %s106, 0
          %s115 = smul.addr %s112, 8
          %s116 = scalar_lea.hbm %s0, %s115
          %s117 = sshll.u32 %s116, 4
          %s118 = int_to_ptr.hbm [resolvable:$true] %s117
          %s119 = sshll.u32 %s109, 4
          %s120 = int_to_ptr.vmem [resolvable:$true] %s119
          %125 = dma.hbm_to_vmem [thread:$0]  %s118, 1024, %s120, %s106, 3584, 512, 32
        $region20: #{tpu_custom_call.1} parent=15 // pred_fallthru
          _
      $region16: #{tpu_custom_call.1} parent=5 // pred_fallthru
        _
      %p126 = scmp.le.s32.totalorder 1, %s13
      %p127 = scmp.lt.s32.totalorder %s13, 17
      %p128 = pnand %p126, %p127
      %p129 = pneg %p128
      // Predicated region
      $region21: #{tpu_custom_call.1} parent=5 // pred_check
        _
      $region22: #{tpu_custom_call.1} parent=5 // pred_check_branch
        %131 = sbr.rel (%p128) target = $region24
      $region23: #{tpu_custom_call.1} parent=5 // pred_region
        %s132 = ssub.s32 %s13, 1
        %s133 = sand.u32 %s42, 1
        %s134 = scalar_lea.sflag [#allocation3], %s133
        %s135 = sand.u32 %s42, 1
        %s136 = smul.addr %s135, 64
        %s137 = scalar_lea.vmem [#allocation2], %s136
        // Predicated region
        $region25: #{tpu_custom_call.1} parent=23 // pred_check
          %p138 = pneg %p55
        $region26: #{tpu_custom_call.1} parent=23 // pred_check_branch
          %140 = sbr.rel (%p138) target = $region28
        $region27: #{tpu_custom_call.1} parent=23 // pred_region
          %142 = dma.done %s134, 1024
        $region28: #{tpu_custom_call.1} parent=23 // pred_fallthru
          _
        %s143 = sand.u32 %s42, 1
        %s144 = scalar_lea.sflag [#allocation3], %s143
        %s145 = sand.u32 %s42, 1
        %s146 = smul.addr %s145, 64
        %s147 = scalar_lea.vmem [#allocation2], %s146
        %p148 = pneg %p55
        %p149 = pneg %p52
        %p150 = pneg %p83
        %p151 = pneg %p80
        %s152 = sand.u32 %s70, 1
        %s153 = scalar_lea.sflag [#allocation4], %s152
        %s154 = sand.u32 %s70, 1
        %s155 = smul.addr %s154, 64
        %s156 = scalar_lea.vmem [#allocation5], %s155
        %s157 = ssub.s32 %s23, %s22
        %s158 = sadd.s32 %s157, 3
        %s159 = smul.u32 4, %s158
        %s160 = smul.u32 2, %s22
        %s161 = smul.u32 4, %s23
        %v162 = vld [vmem:[%s137] sm:$0xff]
        %v163 = vld [vmem:[%s137 + $0x8] sm:$0xff]
        %v164 = vld [vmem:[%s137 + $0x10] sm:$0xff]
        %v165 = vld [vmem:[%s137 + $0x18] sm:$0xff]
        %v166 = vld [vmem:[%s137 + $0x20] sm:$0xff]
        %v167 = vld [vmem:[%s137 + $0x28] sm:$0xff]
        %v168 = vld [vmem:[%s137 + $0x30] sm:$0xff]
        %v169 = vld [vmem:[%s137 + $0x38] sm:$0xff]
        %170 = vst [vmem:[%s156] sm:$0xff] %v162
        %171 = vst [vmem:[%s156 + $0x8] sm:$0xff] %v163
        %172 = vst [vmem:[%s156 + $0x10] sm:$0xff] %v164
        %173 = vst [vmem:[%s156 + $0x18] sm:$0xff] %v165
        %174 = vst [vmem:[%s156 + $0x20] sm:$0xff] %v166
        %175 = vst [vmem:[%s156 + $0x28] sm:$0xff] %v167
        %176 = vst [vmem:[%s156 + $0x30] sm:$0xff] %v168
        %177 = vst [vmem:[%s156 + $0x38] sm:$0xff] %v169
        %s178 = sand.u32 %s70, 1
        %s179 = scalar_lea.sflag [#allocation4], %s178
        %s180 = sand.u32 %s70, 1
        %s181 = smul.addr %s180, 64
        %s182 = scalar_lea.vmem [#allocation5], %s181
        // Predicated region
        $region29: #{tpu_custom_call.1} parent=23 // pred_check
          %p183 = pneg %p80
        $region30: #{tpu_custom_call.1} parent=23 // pred_check_branch
          %185 = sbr.rel (%p183) target = $region32
        $region31: #{tpu_custom_call.1} parent=23 // pred_region
          %s186 = smul.u32 2, %s22
          %s187 = smul.u32 4, %s23
          %189 = vsyncadd %s179, 0
          %s190 = smul.addr %s186, 16
          %s191 = sadd.s32 %s187, %s190
          %s192 = smul.addr %s191, 8
          %s193 = scalar_lea.hbm %s1, %s192
          %s194 = sshll.u32 %s182, 4
          %s195 = int_to_ptr.vmem [resolvable:$true] %s194
          %s196 = sshll.u32 %s193, 4
          %s197 = int_to_ptr.hbm [resolvable:$true] %s196
          %202 = dma.vmem_to_hbm [thread:$0]  %s195, 1024, %s197, %s179, 512, 2048, 32
        $region32: #{tpu_custom_call.1} parent=23 // pred_fallthru
          _
      $region24: #{tpu_custom_call.1} parent=5 // pred_fallthru
        _
      %p203 = scmp.le.s32.totalorder 2, %s13
      // Predicated region
      $region33: #{tpu_custom_call.1} parent=5 // pred_check
        %p204 = pneg %p203
      $region34: #{tpu_custom_call.1} parent=5 // pred_check_branch
        %206 = sbr.rel (%p204) target = $region36
      $region35: #{tpu_custom_call.1} parent=5 // pred_region
        %s207 = ssub.s32 %s13, 2
        // Predicated region
        $region37: #{tpu_custom_call.1} parent=35 // pred_check
          %p208 = pneg %p86
        $region38: #{tpu_custom_call.1} parent=35 // pred_check_branch
          %210 = sbr.rel (%p208) target = $region40
        $region39: #{tpu_custom_call.1} parent=35 // pred_region
          %s211 = sand.u32 %s71, 1
          %s212 = scalar_lea.sflag [#allocation4], %s211
          %s213 = sand.u32 %s71, 1
          %s214 = smul.addr %s213, 64
          %s215 = scalar_lea.vmem [#allocation5], %s214
          %217 = dma.done %s212, 1024
        $region40: #{tpu_custom_call.1} parent=35 // pred_fallthru
          _
      $region36: #{tpu_custom_call.1} parent=5 // pred_fallthru
        _
    $region6: #{tpu_custom_call.1} parent=1 // loop_footer
      %s17 = sadd.s32 1, %s13
    $region7: #{tpu_custom_call.1} parent=1 // loop_footer_branch
      %12 = sbr.rel target = $region3
    $region8: #{tpu_custom_call.1} parent=1 // loop_exit
      _
    %218 = vsyncpa [#allocation3], 1
    %s219 = scalar_lea.sflag [#allocation3], 1
    %220 = vsyncpa %s219, 1
    %221 = vsyncpa [#allocation4], 1
    %s222 = scalar_lea.sflag [#allocation4], 1
    %223 = vsyncpa %s222, 1

</llo_original>
